<compile_context>
chip_gen: v6e
topology: v6e:2x2x1
jax: 0.10.0
libtpu: 0.0.40
codegen_flags: <defaults>
</compile_context>

<pallas_src>
import jax
import jax.numpy as jnp
from jax.experimental import pallas as pl
from jax.experimental.pallas import tpu as pltpu


TM_DEFAULT = 512
TN_DEFAULT = 512
TK_DEFAULT = 1024
VMEM_LIMIT_BYTES = 48 * 1024 * 1024  # under v7x's 64 MiB physical, ample on v5e/v6e


def _round_up(x: int, m: int) -> int:
    return (x + m - 1) // m * m


def _sublane(dtype) -> int:
    # Second-to-last block-dim granularity per dtype width.
    return {4: 8, 2: 16, 1: 32}.get(jnp.dtype(dtype).itemsize, 8)


def _choose_tk(k_dim: int, tk: int = TK_DEFAULT) -> int:
    return min(tk, _round_up(k_dim, 128))


def prepare_weight(weight: jax.Array, *, tk: int = TK_DEFAULT,
                   compute_dtype=None) -> jax.Array:
    """One-time parameter prep (NOT in the per-call hot path).

    PyTorch nn.Linear weight [out_features, in_features] ->
    MXU-friendly [K_pad, N_pad]:
      * transpose so the kernel contracts with a plain (K,N) layout,
      * zero-pad K to a K-tile multiple (zeros contribute exactly 0 to the reduction),
      * pad N to a lane (128) multiple (padded output columns are never written),
      * optionally cast once to bf16 (MXU-native, halves HBM/VMEM traffic).
    """
    n_dim, k_dim = weight.shape
    wt = weight.T
    if compute_dtype is not None:
        wt = wt.astype(compute_dtype)
    tk_eff = _choose_tk(k_dim, tk)
    kp = _round_up(k_dim, tk_eff)
    np_ = _round_up(n_dim, 128)
    if (kp, np_) != (k_dim, n_dim):
        wt = jnp.pad(wt, ((0, kp - k_dim), (0, np_ - n_dim)))
    return wt


def _linear_relu_kernel_accout(x_ref, w_ref, o_ref):
    # f32 output: accumulate directly into the resident output block (its block
    # index (i, j) is constant over the K axis, so it stays in VMEM).
    k = pl.program_id(2)

    @pl.when(k == 0)
    def _():
        o_ref[...] = jnp.zeros_like(o_ref)

    o_ref[...] += jnp.dot(x_ref[...], w_ref[...],
                          preferred_element_type=jnp.float32)

    @pl.when(k == pl.num_programs(2) - 1)
    def _():
        o_ref[...] = jnp.maximum(o_ref[...], 0.0)


def _linear_relu_kernel_scratch(x_ref, w_ref, o_ref, acc_ref):
    # Non-f32 output: f32 VMEM scratch accumulator, ReLU + cast on the last K step.
    k = pl.program_id(2)

    @pl.when(k == 0)
    def _():
        acc_ref[...] = jnp.zeros_like(acc_ref)

    acc_ref[...] += jnp.dot(x_ref[...], w_ref[...],
                            preferred_element_type=jnp.float32)

    @pl.when(k == pl.num_programs(2) - 1)
    def _():
        o_ref[...] = jnp.maximum(acc_ref[...], 0.0).astype(o_ref.dtype)


def _linear_relu_pallas(x2d: jax.Array, wt: jax.Array, n_out: int, out_dtype,
                        tm: int, tn: int, tk: int) -> jax.Array:
    m, kp_x = x2d.shape
    kp, np_ = wt.shape
    assert kp_x == kp, "x K padding must match prepared weight K padding"

    sub = max(_sublane(x2d.dtype), _sublane(out_dtype))

    # Clamp tiles for small problems (keep lane/sublane alignment).
    tm = min(tm, _round_up(m, sub))
    tn = min(tn, np_)            # np_ is a multiple of 128
    tk = min(tk, kp)             # kp is a multiple of 128
    while kp % tk:
        tk -= 128                # fall back to a 128-multiple divisor of kp

    # v7x megacore: make sure the parallel (M,N) grid has >= 2 tiles so both
    # TensorCores get work; neutral on single-core v5e/v6e.
    if pl.cdiv(m, tm) * pl.cdiv(n_out, tn) == 1:
        if tn >= 256:
            tn = _round_up(tn // 2, 128)
        elif tm >= 2 * sub:
            tm = _round_up(tm // 2, sub)

    grid = (pl.cdiv(m, tm), pl.cdiv(n_out, tn), kp // tk)

    if jnp.dtype(out_dtype) == jnp.dtype(jnp.float32):
        kernel = _linear_relu_kernel_accout
        scratch = []
    else:
        kernel = _linear_relu_kernel_scratch
        scratch = [pltpu.VMEM((tm, tn), jnp.float32)]

    return pl.pallas_call(
        kernel,
        out_shape=jax.ShapeDtypeStruct((m, n_out), out_dtype),
        grid_spec=pltpu.PrefetchScalarGridSpec(
            num_scalar_prefetch=0,
            grid=grid,
            in_specs=[
                pl.BlockSpec((tm, tk), lambda i, j, k: (i, k)),   # x  [M, Kp]
                pl.BlockSpec((tk, tn), lambda i, j, k: (k, j)),   # wt [Kp, Np]
            ],
            out_specs=pl.BlockSpec((tm, tn), lambda i, j, k: (i, j)),
            scratch_shapes=scratch,
        ),
        compiler_params=pltpu.CompilerParams(
            dimension_semantics=("parallel", "parallel", "arbitrary"),
            vmem_limit_bytes=VMEM_LIMIT_BYTES,
        ),
    )(x2d, wt)


def linear_block_forward(x: jax.Array, wt: jax.Array, out_features=None, *,
                         compute_dtype=None, force_pallas: bool = False,
                         tm: int = TM_DEFAULT, tn: int = TN_DEFAULT,
                         tk: int = TK_DEFAULT) -> jax.Array:
    """Pallas equivalent of LinearBlock.forward with the default cfg:
       relu(x @ W^T); bias=False, no norm, dropout p=0 (both no-ops).

    x:  [..., in_features]
    wt: prepared weight from prepare_weight(), shape [K_pad, N_pad]
    returns [..., out_features] in x's dtype.
    """
    kp, np_ = wt.shape
    n_out = int(np_) if out_features is None else int(out_features)
    k_dim = x.shape[-1]
    out_dtype = x.dtype

    lead = x.shape[:-1]
    m = 1
    for d in lead:
        m *= d
    x2d = x.reshape(m, k_dim)

    if compute_dtype is not None:
        x2d = x2d.astype(compute_dtype)
    if x2d.dtype != wt.dtype:
        x2d = x2d.astype(wt.dtype)

    # Only K needs zero-padding (garbage K would feed the reduction); ragged M/N
    # tail tiles are handled in-kernel by masked loads/stores, no per-call pad.
    if k_dim != kp:
        x2d = jnp.pad(x2d, ((0, 0), (0, kp - k_dim)))

    # Tiny problems: per-grid-step + launch overhead dominates; let XLA fuse it.
    tiny = (m * kp * n_out) < (1 << 22)
    if tiny and not force_pallas:
        out2d = jnp.maximum(
            jnp.dot(x2d, wt, preferred_element_type=jnp.float32), 0.0
        )[:, :n_out].astype(out_dtype)
    else:
        out2d = _linear_relu_pallas(x2d, wt, n_out, out_dtype, tm, tn, tk)

    return out2d.reshape(*lead, n_out)


if __name__ == "__main__":
    key = jax.random.PRNGKey(0)
    kx, kw = jax.random.split(key)

    in_features, out_features = 32, 64
    x = jax.random.normal(kx, (2, 8, in_features), dtype=jnp.float32)

    # Deterministic kaiming-uniform-like init for nn.Linear weight (bias=False).
    bound = 1.0 / (in_features ** 0.5)
    weight = jax.random.uniform(kw, (out_features, in_features),
                                dtype=jnp.float32, minval=-bound, maxval=bound)

    ref = jnp.maximum(jnp.einsum("bsi,oi->bso", x, weight), 0.0)

    # f32 path (direct accumulation into the output block), Pallas forced.
    wt_f32 = prepare_weight(weight)
    out = linear_block_forward(x, wt_f32, out_features, force_pallas=True)
    jax.block_until_ready(out)
    assert out.shape == (2, 8, out_features)
    assert jnp.allclose(out, ref, atol=1e-5, rtol=1e-5)

    # bf16 compute path (one-time bf16 weight cast, f32 accumulation, f32 output).
    wt_bf16 = prepare_weight(weight, compute_dtype=jnp.bfloat16)
    out_bf16 = linear_block_forward(x, wt_bf16, out_features,
                                    compute_dtype=jnp.bfloat16, force_pallas=True)
    jax.block_until_ready(out_bf16)
    assert out_bf16.dtype == x.dtype
    assert jnp.allclose(out_bf16, ref, atol=5e-2, rtol=5e-2)

    # bf16 in / bf16 out (exercises the f32-scratch-accumulator kernel variant).
    out_bf16_io = linear_block_forward(x.astype(jnp.bfloat16), wt_bf16,
                                       out_features, force_pallas=True)
    jax.block_until_ready(out_bf16_io)
    assert out_bf16_io.dtype == jnp.bfloat16
    assert jnp.allclose(out_bf16_io.astype(jnp.float32), ref, atol=5e-2, rtol=5e-2)

    # Auto-dispatch (XLA fallback for tiny shapes) agrees with the reference.
    out_auto = linear_block_forward(x, wt_f32, out_features)
    jax.block_until_ready(out_auto)
    assert jnp.allclose(out_auto, ref, atol=1e-5, rtol=1e-5)

    print("KERNEL_OK")
</pallas_src>

<mosaic_0001>
module attributes {stable_mosaic.version = 11 : i64} {
  func.func @_linear_relu_kernel_accout(%arg0: i32, %arg1: i32, %arg2: i32, %arg3: memref<8x128xf32, #tpu.memory_space<vmem>>, %arg4: memref<128x128xf32, #tpu.memory_space<vmem>>, %arg5: memref<8x128xf32, #tpu.memory_space<vmem>>) attributes {dimension_semantics = [#tpu.dimension_semantics<parallel>, #tpu.dimension_semantics<parallel>, #tpu.dimension_semantics<arbitrary>], iteration_bounds = array<i64: 2, 1, 1>, scalar_prefetch = 0 : i64, scratch_operands = 0 : i64, tpu.core_type = #tpu.core_type<tc>, window_params = [{transform_indices = @transform_0, window_bounds = array<i64: 8, 128>}, {transform_indices = @transform_1, window_bounds = array<i64: 128, 128>}, {transform_indices = @transform_2, window_bounds = array<i64: 8, 128>}]} {
    %c0_i32 = arith.constant 0 : i32
    %0 = arith.cmpi eq, %arg2, %c0_i32 : i32
    %1 = arith.extui %0 : i1 to i32
    %c0_i32_0 = arith.constant 0 : i32
    %2 = arith.cmpi ne, %1, %c0_i32_0 : i32
    scf.if %2 {
      %cst_10 = arith.constant 0.000000e+00 : f32
      %12 = vector.broadcast %cst_10 : f32 to vector<8x128xf32>
      %c0_11 = arith.constant 0 : index
      %c0_12 = arith.constant 0 : index
      %13 = vector.load %arg5[%c0_11, %c0_12] : memref<8x128xf32, #tpu.memory_space<vmem>>, vector<8x128xf32>
      tpu.vector_store %arg5[%c0_11, %c0_12], %12 {strides = array<i32>} : memref<8x128xf32, #tpu.memory_space<vmem>>, vector<8x128xf32>,
    } else {
    }
    %c0 = arith.constant 0 : index
    %c0_1 = arith.constant 0 : index
    %3 = vector.load %arg5[%c0, %c0_1] : memref<8x128xf32, #tpu.memory_space<vmem>>, vector<8x128xf32>
    %c0_2 = arith.constant 0 : index
    %c0_3 = arith.constant 0 : index
    %4 = vector.load %arg3[%c0_2, %c0_3] : memref<8x128xf32, #tpu.memory_space<vmem>>, vector<8x128xf32>
    %c0_4 = arith.constant 0 : index
    %c0_5 = arith.constant 0 : index
    %5 = vector.load %arg4[%c0_4, %c0_5] : memref<128x128xf32, #tpu.memory_space<vmem>>, vector<128x128xf32>
    %cst = arith.constant dense<0.000000e+00> : vector<8x128xf32>
    %6 = tpu.matmul %4, %5, %cst {dimension_numbers = #tpu.dot_dimension_numbers<[1], [0], [0], [1], [0, 0, 1, 1], [], []>} : vector<8x128xf32>, vector<128x128xf32>, vector<8x128xf32> -> vector<8x128xf32>
    %7 = arith.addf %3, %6 : vector<8x128xf32>
    %c0_6 = arith.constant 0 : index
    %c0_7 = arith.constant 0 : index
    %8 = vector.load %arg5[%c0_6, %c0_7] : memref<8x128xf32, #tpu.memory_space<vmem>>, vector<8x128xf32>
    tpu.vector_store %arg5[%c0_6, %c0_7], %7 {strides = array<i32>} : memref<8x128xf32, #tpu.memory_space<vmem>>, vector<8x128xf32>,
    %c0_i32_8 = arith.constant 0 : i32
    %9 = arith.cmpi eq, %arg2, %c0_i32_8 : i32
    %10 = arith.extui %9 : i1 to i32
    %c0_i32_9 = arith.constant 0 : i32
    %11 = arith.cmpi ne, %10, %c0_i32_9 : i32
    scf.if %11 {
      %c0_10 = arith.constant 0 : index
      %c0_11 = arith.constant 0 : index
      %12 = vector.load %arg5[%c0_10, %c0_11] : memref<8x128xf32, #tpu.memory_space<vmem>>, vector<8x128xf32>
      %cst_12 = arith.constant 0.000000e+00 : f32
      %13 = vector.broadcast %cst_12 : f32 to vector<8x128xf32>
      %14 = arith.maximumf %12, %13 : vector<8x128xf32>
      %c0_13 = arith.constant 0 : index
      %c0_14 = arith.constant 0 : index
      %15 = vector.load %arg5[%c0_13, %c0_14] : memref<8x128xf32, #tpu.memory_space<vmem>>, vector<8x128xf32>
      tpu.vector_store %arg5[%c0_13, %c0_14], %14 {strides = array<i32>} : memref<8x128xf32, #tpu.memory_space<vmem>>, vector<8x128xf32>,
    } else {
    }
    return
  }
  func.func @transform_0(%arg0: i32, %arg1: i32, %arg2: i32) -> (i32, i32) {
    %c0_i32 = arith.constant 0 : i32
    return %arg0, %arg2 : i32, i32
  }
  func.func @transform_1(%arg0: i32, %arg1: i32, %arg2: i32) -> (i32, i32) {
    %c0_i32 = arith.constant 0 : i32
    return %arg2, %arg1 : i32, i32
  }
  func.func @transform_2(%arg0: i32, %arg1: i32, %arg2: i32) -> (i32, i32) {
    %c0_i32 = arith.constant 0 : i32
    return %arg0, %arg1 : i32, i32
  }
}

</mosaic_0001>

<llo_original>
// kernel: tpu_custom_call.1
$region0: #{tpu_custom_call.1}
  #allocation0 [shape = 'u32[]', space=smem, size = 0x4, offset = 0x4, fixed_abs, tag = 'smem constant byte address 0x4 - core index']
  #allocation1 [shape = 'u32[144,128]{1,0:T(1,128)}', space=vmem, size = 0x12000, scoped, tag = 'internal scratch']
  %s0 = inlined_call_operand.hbm [shape: f32[16,128], index: 0, kind: input, shape index: {}]
  %s1 = inlined_call_operand.hbm [shape: f32[128,128], index: 1, kind: input, shape index: {}]
  %s2 = inlined_call_operand.hbm [shape: f32[16,64], index: 2, kind: output, shape index: {}]
  %s3 = sld [smem:[#allocation0]]
  $region57: #{tpu_custom_call.1} parent=0
    _
  %s5 = ssub.s32 1, %s3
  %s6 = scalar_select 0, %s5, %s3
  $region1: #{tpu_custom_call.1} parent=0
    #allocation2 [shape = 'u8[8192]{0}', space=vmem, size = 0x2000, scoped, tag = 'input window, operand 0']
    #allocation3 [shape = 's32[2]{0}', space=sflag, size = 0x8, scoped, tag = 'scoped memory for tpu_custom_call.1']
    #allocation4 [shape = 's32[2]{0}', space=sflag, size = 0x8, scoped, tag = 'scoped memory for tpu_custom_call.1']
    #allocation5 [shape = 'u8[65536]{0}', space=vmem, size = 0x10000, scoped, tag = 'input window, operand 1, single buffered']
    #allocation6 [shape = 's32[1]{0}', space=sflag, size = 0x4, scoped, tag = 'scoped memory for tpu_custom_call.1']
    #allocation7 [shape = 'u8[8192]{0}', space=vmem, size = 0x2000, scoped, tag = 'output window, operand 0']
    %7 = vsyncpa [#allocation3], 0
    %s8 = scalar_lea.sflag [#allocation3], 1
    %9 = vsyncpa %s8, 0
    %10 = vsyncpa [#allocation6], 0
    %11 = vsyncpa [#allocation4], 0
    %s12 = scalar_lea.sflag [#allocation4], 1
    %13 = vsyncpa %s12, 0
    loop: start=0, step=1, limit=4
    $region2: #{tpu_custom_call.1} parent=1 // loop_pre_header
      _
    $region3: #{tpu_custom_call.1} parent=1 // loop_header
      %s15 = sphi 0, %s19
      %p16 = scmp.ge.s32.totalorder %s15, 4
      %s22 = sphi 0, %s41
      %s23 = sphi 0, %s37
      %s24 = sphi 0, %s33
      %s25 = sphi 0, %s22
      %s26 = sphi 0, %s23
      %s27 = sphi 0, %s24
      %s28 = sphi 0, %s25
      %s29 = sphi 0, %s26
      %s30 = sphi 0, %s27
      %s46 = sphi 0, %s48
      %s49 = sphi 0, %s46
      %s50 = sphi 0, %s49
      %s66 = sphi 0, %s50
      %s74 = sphi 0, %s76
      %s77 = sphi 0, %s74
      %s78 = sphi 0, %s77
      %s94 = sphi 0, %s78
      %s102 = sphi 0, %s104
      %s105 = sphi 0, %s102
      %s106 = sphi 0, %s105
      %s122 = sphi 0, %s106
    $region4: #{tpu_custom_call.1} parent=1 // loop_header_branch
      %18 = sbr.rel (%p16) target = $region8
    $region5: #{tpu_custom_call.1} parent=1 // loop_body
      %s20 = ssub.s32 %s15, 1
      %s21 = ssub.s32 %s15, 2
      %s31 = sadd.s32 1, %s24
      %p32 = scmp.ge.s32.totalorder %s31, 1
      %s33 = scalar_select %p32, 0, %s31
      %s34 = sadd.s32 1, %s23
      %s35 = scalar_select %p32, %s34, %s23
      %p36 = scmp.ge.s32.totalorder %s35, 1
      %s37 = scalar_select %p36, 0, %s35
      %s38 = sadd.s32 1, %s22
      %s39 = scalar_select %p36, %s38, %s22
      %p40 = scmp.ge.s32.totalorder %s39, 2
      %s41 = scalar_select %p40, 0, %s39
      %s42 = ssub.s32 %s22, %s41
      %s43 = ssub.s32 %s24, %s33
      %s44 = sor.u32 %s42, %s43
      %p45 = scmp.eq.s32.totalorder %s44, 0
      %s47 = sadd.s32 %s46, 1
      %s48 = scalar_select %p45, %s46, %s47
      %p51 = pneg %p45
      %p52 = scmp.eq.s32.totalorder %s15, 1
      %p53 = por %p51, %p52
      %p54 = scmp.ne.s32.totalorder %s46, %s49
      %p55 = scmp.eq.s32.totalorder %s15, 0
      %p56 = por %p54, %p55
      %p57 = scmp.ne.s32.totalorder %s46, %s49
      %p58 = scmp.eq.s32.totalorder %s20, 1
      %p59 = por %p57, %p58
      %p60 = scmp.ne.s32.totalorder %s49, %s50
      %p61 = scmp.eq.s32.totalorder %s20, 0
      %p62 = por %p60, %p61
      %p63 = scmp.ne.s32.totalorder %s49, %s50
      %p64 = scmp.eq.s32.totalorder %s21, 1
      %p65 = por %p63, %p64
      %p67 = scmp.ne.s32.totalorder %s50, %s66
      %p68 = scmp.eq.s32.totalorder %s21, 0
      %p69 = por %p67, %p68
      %s70 = ssub.s32 %s24, %s33
      %s71 = ssub.s32 %s23, %s37
      %s72 = sor.u32 %s70, %s71
      %p73 = scmp.eq.s32.totalorder %s72, 0
      %s75 = sadd.s32 %s74, 1
      %s76 = scalar_select %p73, %s74, %s75
      %p79 = pneg %p73
      %p80 = scmp.eq.s32.totalorder %s15, 1
      %p81 = por %p79, %p80
      %p82 = scmp.ne.s32.totalorder %s74, %s77
      %p83 = scmp.eq.s32.totalorder %s15, 0
      %p84 = por %p82, %p83
      %p85 = scmp.ne.s32.totalorder %s74, %s77
      %p86 = scmp.eq.s32.totalorder %s20, 1
      %p87 = por %p85, %p86
      %p88 = scmp.ne.s32.totalorder %s77, %s78
      %p89 = scmp.eq.s32.totalorder %s20, 0
      %p90 = por %p88, %p89
      %p91 = scmp.ne.s32.totalorder %s77, %s78
      %p92 = scmp.eq.s32.totalorder %s21, 1
      %p93 = por %p91, %p92
      %p95 = scmp.ne.s32.totalorder %s78, %s94
      %p96 = scmp.eq.s32.totalorder %s21, 0
      %p97 = por %p95, %p96
      %s98 = ssub.s32 %s22, %s41
      %s99 = ssub.s32 %s23, %s37
      %s100 = sor.u32 %s98, %s99
      %p101 = scmp.eq.s32.totalorder %s100, 0
      %s103 = sadd.s32 %s102, 1
      %s104 = scalar_select %p101, %s102, %s103
      %p107 = pneg %p101
      %p108 = scmp.eq.s32.totalorder %s15, 1
      %p109 = por %p107, %p108
      %p110 = scmp.ne.s32.totalorder %s102, %s105
      %p111 = scmp.eq.s32.totalorder %s15, 0
      %p112 = por %p110, %p111
      %p113 = scmp.ne.s32.totalorder %s102, %s105
      %p114 = scmp.eq.s32.totalorder %s20, 1
      %p115 = por %p113, %p114
      %p116 = scmp.ne.s32.totalorder %s105, %s106
      %p117 = scmp.eq.s32.totalorder %s20, 0
      %p118 = por %p116, %p117
      %p119 = scmp.ne.s32.totalorder %s105, %s106
      %p120 = scmp.eq.s32.totalorder %s21, 1
      %p121 = por %p119, %p120
      %p123 = scmp.ne.s32.totalorder %s106, %s122
      %p124 = scmp.eq.s32.totalorder %s21, 0
      %p125 = por %p123, %p124
      %p126 = scmp.le.s32.totalorder 1, %s15
      %p127 = scmp.lt.s32.totalorder %s15, 3
      %p128 = pnand %p126, %p127
      %p129 = pneg %p128
      // Predicated region
      $region9: #{tpu_custom_call.1} parent=5 // pred_check
        _
      $region10: #{tpu_custom_call.1} parent=5 // pred_check_branch
        %131 = sbr.rel (%p128) target = $region12
      $region11: #{tpu_custom_call.1} parent=5 // pred_region
        %s132 = ssub.s32 %s15, 1
        // Predicated region
        $region13: #{tpu_custom_call.1} parent=11 // pred_check
          %p133 = pneg %p90
        $region14: #{tpu_custom_call.1} parent=11 // pred_check_branch
          %135 = sbr.rel (%p133) target = $region16
        $region15: #{tpu_custom_call.1} parent=11 // pred_region
          %s136 = smul.u32 16, %s27
          %s138 = ssub.s32 2048, 2048
          %139 = vsyncadd [#allocation6], %s138
          %s140 = sadd.s32 %s26, %s136
          %s141 = smul.addr %s140, 128
          %s142 = scalar_lea.hbm %s1, %s141
          %s143 = sshll.u32 [#allocation5], 4
          %s144 = int_to_ptr.vmem [resolvable:$true] %s143
          %149 = dma.hbm_to_vmem [thread:$0]  %s142, 2048, %s144, [#allocation6], 128, 128, 8
        $region16: #{tpu_custom_call.1} parent=11 // pred_fallthru
          _
      $region12: #{tpu_custom_call.1} parent=5 // pred_fallthru
        _
      %p150 = scmp.lt.s32.totalorder %s15, 2
      // Predicated region
      $region17: #{tpu_custom_call.1} parent=5 // pred_check
        %p151 = pneg %p150
      $region18: #{tpu_custom_call.1} parent=5 // pred_check_branch
        %153 = sbr.rel (%p151) target = $region20
      $region19: #{tpu_custom_call.1} parent=5 // pred_region
        // Predicated region
        $region21: #{tpu_custom_call.1} parent=19 // pred_check
          %p154 = pneg %p56
        $region22: #{tpu_custom_call.1} parent=19 // pred_check_branch
          %156 = sbr.rel (%p154) target = $region24
        $region23: #{tpu_custom_call.1} parent=19 // pred_region
          %s157 = sand.u32 %s46, 1
          %s158 = scalar_lea.sflag [#allocation3], %s157
          %s159 = sand.u32 %s46, 1
          %s160 = smul.addr %s159, 8
          %s161 = scalar_lea.vmem [#allocation2], %s160
          %s163 = ssub.s32 128, 128
          %164 = vsyncadd %s158, %s163
          %s165 = sadd.s32 %s24, %s22
          %s166 = smul.addr %s165, 128
          %s167 = scalar_lea.hbm %s0, %s166
          %s169 = sshll.u32 %s161, 4
          %s170 = int_to_ptr.vmem [resolvable:$true] %s169
          %172 = dma.hbm_to_vmem [thread:$0]  %s167, 128, %s170, %s158
        $region24: #{tpu_custom_call.1} parent=19 // pred_fallthru
          _
      $region20: #{tpu_custom_call.1} parent=5 // pred_fallthru
        _
      %p173 = scmp.le.s32.totalorder 1, %s15
      %p174 = scmp.lt.s32.totalorder %s15, 3
      %p175 = pnand %p173, %p174
      %p176 = pneg %p175
      // Predicated region
      $region25: #{tpu_custom_call.1} parent=5 // pred_check
        _
      $region26: #{tpu_custom_call.1} parent=5 // pred_check_branch
        %178 = sbr.rel (%p175) target = $region28
      $region27: #{tpu_custom_call.1} parent=5 // pred_region
        %s179 = ssub.s32 %s15, 1
        %s180 = sand.u32 %s49, 1
        %s181 = scalar_lea.sflag [#allocation3], %s180
        %s182 = sand.u32 %s49, 1
        %s183 = smul.addr %s182, 8
        %s184 = scalar_lea.vmem [#allocation2], %s183
        // Predicated region
        $region29: #{tpu_custom_call.1} parent=27 // pred_check
          %p185 = pneg %p62
        $region30: #{tpu_custom_call.1} parent=27 // pred_check_branch
          %187 = sbr.rel (%p185) target = $region32
        $region31: #{tpu_custom_call.1} parent=27 // pred_region
          %188 = dma.done %s181, 128
        $region32: #{tpu_custom_call.1} parent=27 // pred_fallthru
          _
        // Predicated region
        $region33: #{tpu_custom_call.1} parent=27 // pred_check
          %p189 = pneg %p90
        $region34: #{tpu_custom_call.1} parent=27 // pred_check_branch
          %191 = sbr.rel (%p189) target = $region36
        $region35: #{tpu_custom_call.1} parent=27 // pred_region
          %192 = dma.done [#allocation6], 2048
        $region36: #{tpu_custom_call.1} parent=27 // pred_fallthru
          _
        %s193 = sand.u32 %s49, 1
        %s194 = scalar_lea.sflag [#allocation3], %s193
        %s195 = sand.u32 %s49, 1
        %s196 = smul.addr %s195, 8
        %s197 = scalar_lea.vmem [#allocation2], %s196
        %p198 = pneg %p62
        %p199 = pneg %p59
        %p200 = pneg %p90
        %p201 = pneg %p87
        %p202 = pneg %p118
        %p203 = pneg %p115
        %s204 = sand.u32 %s105, 1
        %s205 = scalar_lea.sflag [#allocation4], %s204
        %s206 = sand.u32 %s105, 1
        %s207 = smul.addr %s206, 8
        %s208 = scalar_lea.vmem [#allocation7], %s207
        %s209 = smul.u32 16, %s27
        %p210 = scmp.eq.s32.totalorder %s27, 0
        // Predicated region
        $region37: #{tpu_custom_call.1} parent=27 // pred_check
          %p211 = pneg %p210
        $region38: #{tpu_custom_call.1} parent=27 // pred_check_branch
          %213 = sbr.rel (%p211) target = $region40
        $region39: #{tpu_custom_call.1} parent=27 // pred_region
          %214 = vst [vmem:[%s208] sm:$0xff] 0.0
        $region40: #{tpu_custom_call.1} parent=27 // pred_fallthru
          _
        %v215 = vld [vmem:[%s208] sm:$0xff]
        %v216 = vld [vmem:[%s184] sm:$0xff]
        %v217 = vld [vmem:[#allocation5] sm:$0xff]
        %v218 = vld [vmem:[#allocation5 + $0x8] sm:$0xff]
        %v219 = vld [vmem:[#allocation5 + $0x10] sm:$0xff]
        %v220 = vld [vmem:[#allocation5 + $0x18] sm:$0xff]
        %v221 = vld [vmem:[#allocation5 + $0x20] sm:$0xff]
        %v222 = vld [vmem:[#allocation5 + $0x28] sm:$0xff]
        %v223 = vld [vmem:[#allocation5 + $0x30] sm:$0xff]
        %v224 = vld [vmem:[#allocation5 + $0x38] sm:$0xff]
        %v225 = vld [vmem:[#allocation5 + $0x40] sm:$0xff]
        %v226 = vld [vmem:[#allocation5 + $0x48] sm:$0xff]
        %v227 = vld [vmem:[#allocation5 + $0x50] sm:$0xff]
        %v228 = vld [vmem:[#allocation5 + $0x58] sm:$0xff]
        %v229 = vld [vmem:[#allocation5 + $0x60] sm:$0xff]
        %v230 = vld [vmem:[#allocation5 + $0x68] sm:$0xff]
        %v231 = vld [vmem:[#allocation5 + $0x70] sm:$0xff]
        %v232 = vld [vmem:[#allocation5 + $0x78] sm:$0xff]
        %233 = vmatprep.subr.mxu0 0.0
        %234 = vmatpush1.msra.mxu0 %v232
        %235 = vmatprep.subr.mxu0 0.0
        %236 = vmatpush1.msra.mxu0 %v231
        %237 = vmatprep.subr.mxu0 0.0
        %238 = vmatpush1.msra.mxu0 %v230
        %239 = vmatprep.subr.mxu0 0.0
        %240 = vmatpush1.msra.mxu0 %v229
        %241 = vmatprep.subr.mxu0 0.0
        %242 = vmatpush1.msra.mxu0 %v228
        %243 = vmatprep.subr.mxu0 0.0
        %244 = vmatpush1.msra.mxu0 %v227
        %245 = vmatprep.subr.mxu0 0.0
        %246 = vmatpush1.msra.mxu0 %v226
        %247 = vmatprep.subr.mxu0 0.0
        %248 = vmatpush1.msra.mxu0 %v225
        %249 = vmatprep.subr.mxu0 0.0
        %250 = vmatpush1.msra.mxu0 %v224
        %251 = vmatprep.subr.mxu0 0.0
        %252 = vmatpush1.msra.mxu0 %v223
        %253 = vmatprep.subr.mxu0 0.0
        %254 = vmatpush1.msra.mxu0 %v222
        %255 = vmatprep.subr.mxu0 0.0
        %256 = vmatpush1.msra.mxu0 %v221
        %257 = vmatprep.subr.mxu0 0.0
        %258 = vmatpush1.msra.mxu0 %v220
        %259 = vmatprep.subr.mxu0 0.0
        %260 = vmatpush1.msra.mxu0 %v219
        %261 = vmatprep.subr.mxu0 0.0
        %262 = vmatpush1.msra.mxu0 %v218
        %263 = vmatprep.subr.mxu0 0.0
        %264 = vmatpush1.msra.mxu0 %v217
        %265 = vmatprep.subr.mxu0 0.0
        %266 = vmatpush2.msra.mxu0 0.0
        %267 = vmatprep.subr.mxu0 0.0
        %268 = vmatpush2.msra.mxu0 0.0
        %269 = vmatprep.subr.mxu0 0.0
        %270 = vmatpush2.msra.mxu0 0.0
        %271 = vmatprep.subr.mxu0 0.0
        %272 = vmatpush2.msra.mxu0 0.0
        %273 = vmatprep.subr.mxu0 0.0
        %274 = vmatpush2.msra.mxu0 0.0
        %275 = vmatprep.subr.mxu0 0.0
        %276 = vmatpush2.msra.mxu0 0.0
        %277 = vmatprep.subr.mxu0 0.0
        %278 = vmatpush2.msra.mxu0 0.0
        %279 = vmatprep.subr.mxu0 0.0
        %280 = vmatpush2.msra.mxu0 0.0
        %281 = vmatprep.subr.mxu0 0.0
        %282 = vmatpush2.msra.mxu0 0.0
        %283 = vmatprep.subr.mxu0 0.0
        %284 = vmatpush2.msra.mxu0 0.0
        %285 = vmatprep.subr.mxu0 0.0
        %286 = vmatpush2.msra.mxu0 0.0
        %287 = vmatprep.subr.mxu0 0.0
        %288 = vmatpush2.msra.mxu0 0.0
        %289 = vmatprep.subr.mxu0 0.0
        %290 = vmatpush2.msra.mxu0 0.0
        %291 = vmatprep.subr.mxu0 0.0
        %292 = vmatpush2.msra.mxu0 0.0
        %293 = vmatprep.subr.mxu0 0.0
        %294 = vmatpush2.msra.mxu0 0.0
        %295 = vmatprep.subr.mxu0 0.0
        %296 = vmatpush2.msra.mxu0 0.0
        %297 = vmatprep.mubr.f32.mxu0 0.0
        %298 = vmatmul.mubr.f32.gmra.mxu0 %v216
        %v299 = vpop.f32.mrf.mxu0
        %v300 = vadd.f32 0.0, %v299
        %v301 = vpop.f32.mrf.mxu0
        %302 = vdwg.mxu0
        %v303 = vadd.f32 %v215, %v300
        %304 = vst [vmem:[%s208] sm:$0xff] %v303
        // Predicated region
        $region41: #{tpu_custom_call.1} parent=27 // pred_check
          %p305 = pneg %p210
        $region42: #{tpu_custom_call.1} parent=27 // pred_check_branch
          %307 = sbr.rel (%p305) target = $region44
        $region43: #{tpu_custom_call.1} parent=27 // pred_region
          %v308 = vld [vmem:[%s208] sm:$0xff]
          %v309 = vmax.f32 %v308, 0.0
          %310 = vst [vmem:[%s208] sm:$0xff] %v309
        $region44: #{tpu_custom_call.1} parent=27 // pred_fallthru
          _
        %s311 = sand.u32 %s105, 1
        %s312 = scalar_lea.sflag [#allocation4], %s311
        %s313 = sand.u32 %s105, 1
        %s314 = smul.addr %s313, 8
        %s315 = scalar_lea.vmem [#allocation7], %s314
        // Predicated region
        $region45: #{tpu_custom_call.1} parent=27 // pred_check
          %p316 = pneg %p115
        $region46: #{tpu_custom_call.1} parent=27 // pred_check_branch
          %318 = sbr.rel (%p316) target = $region48
        $region47: #{tpu_custom_call.1} parent=27 // pred_region
          %s320 = ssub.s32 128, 128
          %321 = vsyncadd %s312, %s320
          %s322 = sadd.s32 %s26, %s25
          %s323 = smul.addr %s322, 128
          %s324 = scalar_lea.hbm %s2, %s323
          %s326 = sshll.u32 %s315, 4
          %s327 = int_to_ptr.vmem [resolvable:$true] %s326
          %329 = dma.vmem_to_hbm [thread:$0]  %s327, 128, %s324, %s312
        $region48: #{tpu_custom_call.1} parent=27 // pred_fallthru
          _
      $region28: #{tpu_custom_call.1} parent=5 // pred_fallthru
        _
      %p330 = scmp.le.s32.totalorder 2, %s15
      // Predicated region
      $region49: #{tpu_custom_call.1} parent=5 // pred_check
        %p331 = pneg %p330
      $region50: #{tpu_custom_call.1} parent=5 // pred_check_branch
        %333 = sbr.rel (%p331) target = $region52
      $region51: #{tpu_custom_call.1} parent=5 // pred_region
        %s334 = ssub.s32 %s15, 2
        // Predicated region
        $region53: #{tpu_custom_call.1} parent=51 // pred_check
          %p335 = pneg %p121
        $region54: #{tpu_custom_call.1} parent=51 // pred_check_branch
          %337 = sbr.rel (%p335) target = $region56
        $region55: #{tpu_custom_call.1} parent=51 // pred_region
          %s338 = sand.u32 %s106, 1
          %s339 = scalar_lea.sflag [#allocation4], %s338
          %s340 = sand.u32 %s106, 1
          %s341 = smul.addr %s340, 8
          %s342 = scalar_lea.vmem [#allocation7], %s341
          %343 = dma.done %s339, 128
        $region56: #{tpu_custom_call.1} parent=51 // pred_fallthru
          _
      $region52: #{tpu_custom_call.1} parent=5 // pred_fallthru
        _
    $region6: #{tpu_custom_call.1} parent=1 // loop_footer
      %s19 = sadd.s32 1, %s15
    $region7: #{tpu_custom_call.1} parent=1 // loop_footer_branch
      %14 = sbr.rel target = $region3
    $region8: #{tpu_custom_call.1} parent=1 // loop_exit
      _
    %344 = vsyncpa [#allocation3], 1
    %s345 = scalar_lea.sflag [#allocation3], 1
    %346 = vsyncpa %s345, 1
    %347 = vsyncpa [#allocation6], 1
    %348 = vsyncpa [#allocation4], 1
    %s349 = scalar_lea.sflag [#allocation4], 1
    %350 = vsyncpa %s349, 1

</llo_original>
